<compile_context>
chip_gen: v7x
topology: tpu7x:2x2x1
jax: 0.10.0
libtpu: 0.0.40
codegen_flags: <defaults>
</compile_context>

<pallas_src>
import jax
import jax.numpy as jnp
import numpy as np
from jax.experimental import pallas as pl
from jax.experimental.pallas import tpu as pltpu

HIDDEN = 64


def _round_up(x, m):
    return (x + m - 1) // m * m


def _cdiv(a, b):
    return -(-a // b)


def _vmem_budget_bytes():
    """(tile-sizing budget, vmem_limit_bytes). Conservative (v7x, 64 MiB VMEM) by default;
    larger on v5e/v6e which have 128 MiB."""
    try:
        kind = jax.devices()[0].device_kind.lower()
    except Exception:
        kind = ""
    if ("v5" in kind) or ("v6" in kind):
        return 72 * 1024 * 1024, 96 * 1024 * 1024
    return 34 * 1024 * 1024, 48 * 1024 * 1024


def _choose_tile_b(B, D, itemsize, vmem_budget):
    """Bytes-driven batch tile (rows), VMEM-accounted, balanced, >=2 tiles for large B."""
    lanes = _round_up(max(D, 1), 128)
    # Per-row VMEM bytes:
    #   x block   : double-buffered, lane-padded to 128 lanes
    #   h / temps : (tb, 64) f32 ReLU intermediate + one fused temporary
    #   out block : (1, tb) f32 lane-dense row, 8-sublane padded, double-buffered
    per_row = 2 * lanes * itemsize + 2 * HIDDEN * 4 + 2 * 8 * 4
    cap = max(128, (vmem_budget // per_row) // 128 * 128)
    mult = 8 * max(1, 4 // itemsize)  # sublane packing: 8 rows (f32), 16 rows (bf16)

    tb_single = _round_up(max(B, 1), mult)
    if B <= 512 and tb_single <= cap:
        return tb_single  # tiny batch: one block

    # Multi-tile: >=2 tiles (keeps both v7x TensorCores busy), balanced so the last tile
    # wastes few OOB rows, and 128-row aligned so the lane-dense (1, tb) output block is a
    # legal BlockSpec when the grid has several steps.
    tb = min(cap, _round_up(_cdiv(B, 2), 128))
    nt = _cdiv(B, tb)
    return _round_up(_cdiv(B, nt), 128)


def ffn_kernel(x_ref, w1_ref, b1_ref, w2_ref, b2_ref, o_ref):
    # fc1 on the MXU, f32 accumulation regardless of input dtype.
    h = jnp.dot(x_ref[...], w1_ref[...], preferred_element_type=jnp.float32)
    # bias + ReLU on the VPU (f32).
    h = jnp.maximum(h + b1_ref[...].astype(jnp.float32), 0.0)
    # fc2 (out features = 1): VPU multiply + lane reduction against the (1, 64) w2 row.
    y = jnp.sum(h * w2_ref[...].astype(jnp.float32), axis=-1)  # (tb,)
    # Lane-dense output row: unmasked stores + dense writeback DMA. b2 is an SMEM scalar.
    o_ref[...] = (y + b2_ref[0]).astype(o_ref.dtype)[None, :]


def ffn_forward(x, w1, b1, w2_row, b2):
    """Fused FFN forward.

    x:(B, D) f32 or bf16, w1:(D, 64), b1:(1, 64), w2_row:(1, 64), b2:(1,).
    Returns (B, 1) f32.  No wrapper-side pad/cast of x (would add a full HBM pass).
    """
    B, D = x.shape
    H = w1.shape[1]
    assert w1.shape == (D, H) and b1.shape == (1, H)
    assert w2_row.shape == (1, H) and b2.shape == (1,)

    # bf16 fast path only when x is already bf16 in HBM; cast only the tiny w1 to match.
    if x.dtype == jnp.bfloat16 and w1.dtype != jnp.bfloat16:
        w1 = w1.astype(jnp.bfloat16)

    itemsize = jnp.dtype(x.dtype).itemsize
    vmem_budget, vmem_limit = _vmem_budget_bytes()
    tb = _choose_tile_b(B, D, itemsize, vmem_budget)
    num_tiles = _cdiv(B, tb)

    cost = pl.CostEstimate(
        flops=2 * B * H * (D + 1),
        transcendentals=0,
        bytes_accessed=B * D * itemsize + B * 4
        + D * H * jnp.dtype(w1.dtype).itemsize + 2 * H * 4 + 4,
    )

    out = pl.pallas_call(
        ffn_kernel,
        out_shape=jax.ShapeDtypeStruct((1, num_tiles * tb), jnp.float32),
        grid=(num_tiles,),
        in_specs=[
            pl.BlockSpec((tb, D), lambda i: (i, 0)),            # x: batch-tiled, pipelined
            pl.BlockSpec((D, H), lambda i: (0, 0)),             # w1: resident
            pl.BlockSpec((1, H), lambda i: (0, 0)),             # b1: resident
            pl.BlockSpec((1, H), lambda i: (0, 0)),             # w2 row: resident
            pl.BlockSpec(memory_space=pltpu.MemorySpace.SMEM),  # b2: SMEM scalar
        ],
        out_specs=pl.BlockSpec((1, tb), lambda i: (0, i)),      # lane-dense output row
        compiler_params=pltpu.CompilerParams(
            dimension_semantics=("parallel",),   # shard batch tiles across TCs (v7x)
            vmem_limit_bytes=vmem_limit,
        ),
        cost_estimate=cost,
    )(x, w1, b1, w2_row, b2)

    # Drop the garbage rows produced by the (masked) out-of-bounds tail of the last tile.
    return out.reshape(-1)[:B].reshape(B, 1)


def init_params(key, input_size, hidden=HIDDEN):
    # Mimics PyTorch nn.Linear default init: uniform(-1/sqrt(fan_in), 1/sqrt(fan_in)).
    k1, k2, k3, k4 = jax.random.split(key, 4)
    bound1 = 1.0 / np.sqrt(input_size)
    w1 = jax.random.uniform(k1, (input_size, hidden), jnp.float32, -bound1, bound1)
    b1 = jax.random.uniform(k2, (1, hidden), jnp.float32, -bound1, bound1)
    bound2 = 1.0 / np.sqrt(hidden)
    w2_row = jax.random.uniform(k3, (1, hidden), jnp.float32, -bound2, bound2)  # fc2 weight as a row
    b2 = jax.random.uniform(k4, (1,), jnp.float32, -bound2, bound2)
    return w1, b1, w2_row, b2


def _reference(x, w1, b1, w2_row, b2):
    return jnp.maximum(x.astype(jnp.float32) @ w1.astype(jnp.float32) + b1, 0.0) @ w2_row.T + b2


if __name__ == "__main__":
    key = jax.random.PRNGKey(0)
    kx, kp, kx2 = jax.random.split(key, 3)

    input_size = 32
    w1, b1, w2_row, b2 = init_params(kp, input_size)

    # Case 1: small aligned batch.
    x = jax.random.normal(kx, (8, input_size), jnp.float32)
    out = jax.block_until_ready(ffn_forward(x, w1, b1, w2_row, b2))
    ref = _reference(x, w1, b1, w2_row, b2)
    np.testing.assert_allclose(np.asarray(out), np.asarray(ref), rtol=1e-5, atol=1e-5)

    # Case 2: ragged batch (exercises the no-pad OOB-masked last tile path).
    x2 = jax.random.normal(kx2, (37, input_size), jnp.float32)
    out2 = jax.block_until_ready(ffn_forward(x2, w1, b1, w2_row, b2))
    ref2 = _reference(x2, w1, b1, w2_row, b2)
    np.testing.assert_allclose(np.asarray(out2), np.asarray(ref2), rtol=1e-5, atol=1e-5)

    # Note: for mem-bound deployments feed x already stored as bf16 in HBM (the kernel
    # keeps f32 accumulation); do NOT cast f32->bf16 in the wrapper (extra HBM pass).

    print("KERNEL_OK")
</pallas_src>

<mosaic_0001>
module attributes {stable_mosaic.version = 11 : i64} {
  func.func @ffn_kernel(%arg0: i32, %arg1: memref<8x32xf32, #tpu.memory_space<vmem>>, %arg2: memref<32x64xf32, #tpu.memory_space<vmem>>, %arg3: memref<1x64xf32, #tpu.memory_space<vmem>>, %arg4: memref<1x64xf32, #tpu.memory_space<vmem>>, %arg5: memref<1xf32, #tpu.memory_space<smem>>, %arg6: memref<1x8xf32, #tpu.memory_space<vmem>>) attributes {dimension_semantics = [#tpu.dimension_semantics<parallel>], iteration_bounds = array<i64: 1>, scalar_prefetch = 0 : i64, scratch_operands = 0 : i64, tpu.core_type = #tpu.core_type<tc>, window_params = [{transform_indices = @transform_0, window_bounds = array<i64: 8, 32>}, {pipeline_mode = #tpu.pipeline_mode<synchronous>, transform_indices = @transform_1, window_bounds = array<i64: 32, 64>}, {pipeline_mode = #tpu.pipeline_mode<synchronous>, transform_indices = @transform_2, window_bounds = array<i64: 1, 64>}, {pipeline_mode = #tpu.pipeline_mode<synchronous>, transform_indices = @transform_3, window_bounds = array<i64: 1, 64>}, {transform_indices = @transform_4, window_bounds = array<i64: 1>}, {transform_indices = @transform_5, window_bounds = array<i64: 1, 8>}]} {
    %c0 = arith.constant 0 : index
    %c0_0 = arith.constant 0 : index
    %0 = vector.load %arg1[%c0, %c0_0] : memref<8x32xf32, #tpu.memory_space<vmem>>, vector<8x32xf32>
    %c0_1 = arith.constant 0 : index
    %c0_2 = arith.constant 0 : index
    %1 = vector.load %arg2[%c0_1, %c0_2] : memref<32x64xf32, #tpu.memory_space<vmem>>, vector<32x64xf32>
    %cst = arith.constant dense<0.000000e+00> : vector<8x64xf32>
    %2 = tpu.matmul %0, %1, %cst {dimension_numbers = #tpu.dot_dimension_numbers<[1], [0], [0], [1], [0, 0, 1, 1], [], []>} : vector<8x32xf32>, vector<32x64xf32>, vector<8x64xf32> -> vector<8x64xf32>
    %c0_3 = arith.constant 0 : index
    %c0_4 = arith.constant 0 : index
    %3 = vector.load %arg3[%c0_3, %c0_4] : memref<1x64xf32, #tpu.memory_space<vmem>>, vector<1x64xf32>
    %4 = vector.broadcast %3 : vector<1x64xf32> to vector<8x64xf32>
    %5 = arith.addf %2, %4 : vector<8x64xf32>
    %cst_5 = arith.constant 0.000000e+00 : f32
    %6 = vector.broadcast %cst_5 : f32 to vector<8x64xf32>
    %7 = arith.maximumf %5, %6 : vector<8x64xf32>
    %c0_6 = arith.constant 0 : index
    %c0_7 = arith.constant 0 : index
    %8 = vector.load %arg4[%c0_6, %c0_7] : memref<1x64xf32, #tpu.memory_space<vmem>>, vector<1x64xf32>
    %9 = vector.broadcast %8 : vector<1x64xf32> to vector<8x64xf32>
    %10 = arith.mulf %7, %9 : vector<8x64xf32>
    %cst_8 = arith.constant dense<0.000000e+00> : vector<8xf32>
    %11 = vector.multi_reduction <add>, %10, %cst_8 [1] : vector<8x64xf32> to vector<8xf32>
    %c0_9 = arith.constant 0 : index
    %12 = memref.load %arg5[%c0_9] : memref<1xf32, #tpu.memory_space<smem>>
    %13 = vector.broadcast %12 : f32 to vector<8xf32>
    %14 = arith.addf %11, %13 : vector<8xf32>
    %15 = vector.shape_cast %14 : vector<8xf32> to vector<1x8xf32>
    %c0_10 = arith.constant 0 : index
    %c0_11 = arith.constant 0 : index
    %16 = vector.load %arg6[%c0_10, %c0_11] : memref<1x8xf32, #tpu.memory_space<vmem>>, vector<1x8xf32>
    tpu.vector_store %arg6[%c0_10, %c0_11], %15 {strides = array<i32>} : memref<1x8xf32, #tpu.memory_space<vmem>>, vector<1x8xf32>,
    return
  }
  func.func @transform_0(%arg0: i32) -> (i32, i32) {
    %c0_i32 = arith.constant 0 : i32
    %c0_i32_0 = arith.constant 0 : i32
    return %arg0, %c0_i32 : i32, i32
  }
  func.func @transform_1(%arg0: i32) -> (i32, i32) {
    %c0_i32 = arith.constant 0 : i32
    %c0_i32_0 = arith.constant 0 : i32
    %c0_i32_1 = arith.constant 0 : i32
    return %c0_i32, %c0_i32_0 : i32, i32
  }
  func.func @transform_2(%arg0: i32) -> (i32, i32) {
    %c0_i32 = arith.constant 0 : i32
    %c0_i32_0 = arith.constant 0 : i32
    %c0_i32_1 = arith.constant 0 : i32
    return %c0_i32, %c0_i32_0 : i32, i32
  }
  func.func @transform_3(%arg0: i32) -> (i32, i32) {
    %c0_i32 = arith.constant 0 : i32
    %c0_i32_0 = arith.constant 0 : i32
    %c0_i32_1 = arith.constant 0 : i32
    return %c0_i32, %c0_i32_0 : i32, i32
  }
  func.func @transform_4(%arg0: i32) -> i32 {
    %c0_i32 = arith.constant 0 : i32
    %c0_i32_0 = arith.constant 0 : i32
    return %c0_i32 : i32
  }
  func.func @transform_5(%arg0: i32) -> (i32, i32) {
    %c0_i32 = arith.constant 0 : i32
    %c0_i32_0 = arith.constant 0 : i32
    return %c0_i32, %arg0 : i32, i32
  }
}

</mosaic_0001>

<llo_original>
// kernel: tpu_custom_call.1
$region0: #{tpu_custom_call.1}
  #allocation0 [shape = 'u32[]', space=smem, size = 0x4, offset = 0x4, fixed_abs, tag = 'smem constant byte address 0x4 - core index']
  #allocation1 [shape = 'u32[144,128]{1,0:T(1,128)}', space=vmem, size = 0x12000, scoped, tag = 'internal scratch']
  #allocation2 [shape = 'f32[1]{0:T(128)S(6)}', space=smem, size = 0x200, scoped, tag = 'scoped memory for tpu_custom_call.1']
  %s0 = inlined_call_operand.hbm [shape: f32[8,32], index: 0, kind: input, shape index: {}]
  %s1 = inlined_call_operand.hbm [shape: f32[32,64], index: 1, kind: input, shape index: {}]
  %s2 = inlined_call_operand.vmem [shape: f32[1,64], index: 2, kind: input, shape index: {}]
  %s3 = inlined_call_operand.vmem [shape: f32[1,64], index: 3, kind: input, shape index: {}]
  %s4 = inlined_call_operand.<no memory space> [shape: f32[1], index: 4, kind: input, shape index: {}]
  %s5 = inlined_call_operand.hbm [shape: f32[1,8], index: 5, kind: output, shape index: {}]
  %s6 = sld [smem:[#allocation0]]
  $region38: #{tpu_custom_call.1} parent=0
    _
  %s8 = ssub.s32 1, %s6
  %s9 = scalar_select 0, %s8, %s6
  %10 = sst [smem:[#allocation2]] %s4
  $region1: #{tpu_custom_call.1} parent=0
    #allocation3 [shape = 'u8[4096]{0}', space=vmem, size = 0x1000, scoped, tag = 'input window, operand 0, single buffered']
    #allocation4 [shape = 's32[1]{0}', space=sflag, size = 0x4, scoped, tag = 'scoped memory for tpu_custom_call.1']
    #allocation5 [shape = 's32[1]{0}', space=sflag, size = 0x4, scoped, tag = 'scoped memory for tpu_custom_call.1']
    #allocation6 [shape = 'u8[16384]{0}', space=vmem, size = 0x4000, scoped, tag = 'input window, operand 1, single buffered']
    #allocation7 [shape = 's32[1]{0}', space=sflag, size = 0x4, scoped, tag = 'scoped memory for tpu_custom_call.1']
    #allocation8 [shape = 'u8[512]{0}', space=vmem, size = 0x400, scoped, tag = 'output window, operand 0, single buffered']
    %11 = vsyncpa [#allocation4], 0
    %12 = vsyncpa [#allocation7], 0
    %13 = vsyncpa [#allocation5], 0
    // Predicated region
    $region2: #{tpu_custom_call.1} parent=1 // pred_check
      _
    $region3: #{tpu_custom_call.1} parent=1 // pred_check_branch
      %15 = sbr.rel (0) target = $region5
    $region4: #{tpu_custom_call.1} parent=1 // pred_region
      %s17 = ssub.s32 128, 128
      %18 = vsyncadd [#allocation4], %s17
      %s20 = sshll.u32 [#allocation3], 4
      %s21 = int_to_ptr.vmem [resolvable:$true] %s20
      %23 = dma.hbm_to_vmem [thread:$0]  %s0, 128, %s21, [#allocation4]
    $region5: #{tpu_custom_call.1} parent=1 // pred_fallthru
      _
    // Predicated region
    $region6: #{tpu_custom_call.1} parent=1 // pred_check
      _
    $region7: #{tpu_custom_call.1} parent=1 // pred_check_branch
      %25 = sbr.rel (0) target = $region9
    $region8: #{tpu_custom_call.1} parent=1 // pred_region
      %s27 = ssub.s32 512, 512
      %28 = vsyncadd [#allocation7], %s27
      %s29 = sshll.u32 [#allocation6], 4
      %s30 = int_to_ptr.vmem [resolvable:$true] %s29
      %35 = dma.hbm_to_vmem [thread:$0]  %s1, 512, %s30, [#allocation7], 128, 128, 8
    $region9: #{tpu_custom_call.1} parent=1 // pred_fallthru
      _
    // Predicated region
    $region10: #{tpu_custom_call.1} parent=1 // pred_check
      _
    $region11: #{tpu_custom_call.1} parent=1 // pred_check_branch
      %37 = sbr.rel (0) target = $region13
    $region12: #{tpu_custom_call.1} parent=1 // pred_region
      _
    $region13: #{tpu_custom_call.1} parent=1 // pred_fallthru
      _
    // Predicated region
    $region14: #{tpu_custom_call.1} parent=1 // pred_check
      _
    $region15: #{tpu_custom_call.1} parent=1 // pred_check_branch
      %39 = sbr.rel (0) target = $region17
    $region16: #{tpu_custom_call.1} parent=1 // pred_region
      _
    $region17: #{tpu_custom_call.1} parent=1 // pred_fallthru
      _
    // Predicated region
    $region18: #{tpu_custom_call.1} parent=1 // pred_check
      _
    $region19: #{tpu_custom_call.1} parent=1 // pred_check_branch
      %41 = sbr.rel (0) target = $region21
    $region20: #{tpu_custom_call.1} parent=1 // pred_region
      _
    $region21: #{tpu_custom_call.1} parent=1 // pred_fallthru
      _
    // Predicated region
    $region22: #{tpu_custom_call.1} parent=1 // pred_check
      _
    $region23: #{tpu_custom_call.1} parent=1 // pred_check_branch
      %43 = sbr.rel (0) target = $region25
    $region24: #{tpu_custom_call.1} parent=1 // pred_region
      %44 = dma.done [#allocation4], 128
    $region25: #{tpu_custom_call.1} parent=1 // pred_fallthru
      _
    // Predicated region
    $region26: #{tpu_custom_call.1} parent=1 // pred_check
      _
    $region27: #{tpu_custom_call.1} parent=1 // pred_check_branch
      %46 = sbr.rel (0) target = $region29
    $region28: #{tpu_custom_call.1} parent=1 // pred_region
      %47 = dma.done [#allocation7], 512
    $region29: #{tpu_custom_call.1} parent=1 // pred_fallthru
      _
    %v48 = vld [vmem:[#allocation3] sm:$0xff]
    %v49 = vld [vmem:[#allocation6] sm:$0xff]
    %v50 = vld [vmem:[#allocation6 + $0x8] sm:$0xff]
    %v51 = vld [vmem:[#allocation6 + $0x10] sm:$0xff]
    %v52 = vld [vmem:[#allocation6 + $0x18] sm:$0xff]
    %v53 = vld [vmem:[%s2] sm:$0x1]
    %v55 = vlaneseq
    %v56 = vshrl.u32 %v55, 7
    %v57 = vsub.s32 0, %v56
    %v58 = vrot.slane %v53, %v57
    %vm60 = vcmask 261120
    %v62 = vsel %vm60, %v48, 0
    %64 = vmatprep.subr.mxu0 0.0
    %65 = vmatpush1.msra.mxu0 %v49
    %66 = vmatprep.subr.mxu0 0.0
    %67 = vmatpush1.msra.mxu0 %v50
    %68 = vmatprep.subr.mxu0 0.0
    %69 = vmatpush1.msra.mxu0 %v51
    %70 = vmatprep.subr.mxu0 0.0
    %71 = vmatpush1.msra.mxu0 %v52
    %72 = vmatprep.subr.mxu0 0.0
    %73 = vmatpush1.msra.mxu0 0.0
    %74 = vmatprep.subr.mxu0 0.0
    %75 = vmatpush1.msra.mxu0 0.0
    %76 = vmatprep.subr.mxu0 0.0
    %77 = vmatpush1.msra.mxu0 0.0
    %78 = vmatprep.subr.mxu0 0.0
    %79 = vmatpush1.msra.mxu0 0.0
    %80 = vmatprep.subr.mxu0 0.0
    %81 = vmatpush1.msra.mxu0 0.0
    %82 = vmatprep.subr.mxu0 0.0
    %83 = vmatpush1.msra.mxu0 0.0
    %84 = vmatprep.subr.mxu0 0.0
    %85 = vmatpush1.msra.mxu0 0.0
    %86 = vmatprep.subr.mxu0 0.0
    %87 = vmatpush1.msra.mxu0 0.0
    %88 = vmatprep.subr.mxu0 0.0
    %89 = vmatpush1.msra.mxu0 0.0
    %90 = vmatprep.subr.mxu0 0.0
    %91 = vmatpush1.msra.mxu0 0.0
    %92 = vmatprep.subr.mxu0 0.0
    %93 = vmatpush1.msra.mxu0 0.0
    %94 = vmatprep.subr.mxu0 0.0
    %95 = vmatpush1.msra.mxu0 0.0
    %96 = vmatprep.subr.mxu0 0.0
    %97 = vmatpush1.msra.mxu0 0.0
    %98 = vmatprep.subr.mxu0 0.0
    %99 = vmatpush1.msra.mxu0 0.0
    %100 = vmatprep.subr.mxu0 0.0
    %101 = vmatpush1.msra.mxu0 0.0
    %102 = vmatprep.subr.mxu0 0.0
    %103 = vmatpush1.msra.mxu0 0.0
    %104 = vmatprep.subr.mxu0 0.0
    %105 = vmatpush1.msra.mxu0 0.0
    %106 = vmatprep.subr.mxu0 0.0
    %107 = vmatpush1.msra.mxu0 0.0
    %108 = vmatprep.subr.mxu0 0.0
    %109 = vmatpush1.msra.mxu0 0.0
    %110 = vmatprep.subr.mxu0 0.0
    %111 = vmatpush1.msra.mxu0 0.0
    %112 = vmatprep.subr.mxu0 0.0
    %113 = vmatpush1.msra.mxu0 0.0
    %114 = vmatprep.subr.mxu0 0.0
    %115 = vmatpush1.msra.mxu0 0.0
    %116 = vmatprep.subr.mxu0 0.0
    %117 = vmatpush1.msra.mxu0 0.0
    %118 = vmatprep.subr.mxu0 0.0
    %119 = vmatpush1.msra.mxu0 0.0
    %120 = vmatprep.subr.mxu0 0.0
    %121 = vmatpush1.msra.mxu0 0.0
    %122 = vmatprep.subr.mxu0 0.0
    %123 = vmatpush1.msra.mxu0 0.0
    %124 = vmatprep.subr.mxu0 0.0
    %125 = vmatpush1.msra.mxu0 0.0
    %126 = vmatprep.subr.mxu0 0.0
    %127 = vmatpush1.msra.mxu0 0.0
    %128 = vmatprep.mubr.f32.mxu0 0.0
    %129 = vmatmul.mubr.f32.gmra.mrb[0].mxu0 %v62
    %v130 = vpop.f32.mrb[0].mxu0
    %v131 = vadd.f32 %v58, %v130
    %v132 = vpop.f32.mrb[0].mxu0
    %133 = vdwg.mxu0
    %v134 = vmax.f32 %v131, 0.0
    %v135 = vld [vmem:[%s3] sm:$0x1]
    %v137 = vlaneseq
    %v138 = vshrl.u32 %v137, 7
    %v139 = vsub.s32 0, %v138
    %v140 = vrot.slane %v135, %v139
    %v142 = vmul.f32 %v134, %v140
    %vm143 = vcmask 523264
    %v144 = vsel %vm143, %v142, 0.0
    %145 = vadd.xlane.f32.xlu0 %v144
    %v146 = vpop.xlane.xlu0 %145
    %s147 = sld [smem:[#allocation2]]
    %v148 = vstv %s147
    %v149 = vadd.f32 %v146, %v148
    %v151 = vlaneseq
    %v152 = vand.u32 %v151, 127
    %v153 = vlaneseq
    %v154 = vshrl.u32 %v153, 7
    %v155 = vsub.s32 %v152, %v154
    %v156 = vrot.slane %v149, %v155
    %vm158 = vcmask 57344
    %159 = vst.msk [vmem:[#allocation8] sm:$0x1] %vm158, %v156
    // Predicated region
    $region30: #{tpu_custom_call.1} parent=1 // pred_check
      _
    $region31: #{tpu_custom_call.1} parent=1 // pred_check_branch
      %161 = sbr.rel (0) target = $region33
    $region32: #{tpu_custom_call.1} parent=1 // pred_region
      %s163 = ssub.s32 16, 16
      %164 = vsyncadd [#allocation5], %s163
      %s166 = sshll.u32 [#allocation8], 4
      %s167 = int_to_ptr.vmem [resolvable:$true] %s166
      %169 = dma.vmem_to_hbm [thread:$0]  %s167, 16, %s5, [#allocation5]
    $region33: #{tpu_custom_call.1} parent=1 // pred_fallthru
      _
    // Predicated region
    $region34: #{tpu_custom_call.1} parent=1 // pred_check
      _
    $region35: #{tpu_custom_call.1} parent=1 // pred_check_branch
      %171 = sbr.rel (0) target = $region37
    $region36: #{tpu_custom_call.1} parent=1 // pred_region
      %172 = dma.done [#allocation5], 16
    $region37: #{tpu_custom_call.1} parent=1 // pred_fallthru
      _
    %173 = vsyncpa [#allocation4], 1
    %174 = vsyncpa [#allocation7], 1
    %175 = vsyncpa [#allocation5], 1

</llo_original>
